<compile_context>
chip_gen: v6e
topology: v6e:2x2x1
jax: 0.10.0
libtpu: 0.0.40
codegen_flags: <defaults>
</compile_context>

<pallas_src>
import functools

import jax
import jax.numpy as jnp
from jax import lax
from jax.experimental import pallas as pl
from jax.experimental.pallas import tpu as pltpu


def embedding_nn_kernel(x_ref, cat_ref, w1c_ref, v_ref, b1_ref, w2_ref, b2_ref,
                        out_ref, *, num_categories):
    x = x_ref[...]                        # (B, C)  f32 continuous features
    cat = cat_ref[...]                    # (B, F)  i32 category indices
    batch, n_feat = cat.shape
    flat = v_ref.shape[0]                 # F*NC padded to a multiple of 128

    # fc1: continuous part.
    h = jnp.dot(x, w1c_ref[...], preferred_element_type=jnp.float32)

    # fc1: categorical part.  Build a (B, flat) one-hot over the flattened
    # (feature, category) axis entirely in-kernel: one hoisted lane iota and
    # F broadcast compares (all 2-D VPU ops, no XLU transpose, no 3-D
    # relayouts), then ONE fused matmul against the pre-folded table@W1 slab.
    lane = lax.broadcasted_iota(jnp.int32, (batch, flat), 1)     # hoisted once
    onehot = jnp.zeros((batch, flat), jnp.float32)
    for f in range(n_feat):               # static, F=4 — unrolled at trace
        onehot = onehot + (
            cat[:, f:f + 1] + f * num_categories == lane).astype(jnp.float32)
    h = h + jnp.dot(onehot, v_ref[...], preferred_element_type=jnp.float32)

    # bias + ReLU + fc2 (single tiny tile; masked store is negligible here and
    # saves a per-call slice dispatch in the wrapper).
    h = jnp.maximum(h + b1_ref[...], 0.0)
    out_ref[...] = (jnp.dot(h, w2_ref[...], preferred_element_type=jnp.float32)
                    + b2_ref[...])


def fold_params(table, w1, b1, w2, b2, *, cont_in, num_embed_features,
                embed_dim):
    """Run ONCE per weight update (NOT per forward call) and cache the result.

    Folds the embedding table into fc1 so the whole categorical path inside
    the kernel is a single matmul:
        V[f*NC + c, :] = table[c] @ W1[cont_in + f*E : cont_in + (f+1)*E, :]
    and zero-pads the flattened dim F*NC up to a multiple of 128 lanes.
    """
    num_categories, _ = table.shape
    hidden = w1.shape[1]
    w1_cont = w1[:cont_in, :]                                      # (C, H)
    w1_emb = w1[cont_in:, :].reshape(num_embed_features, embed_dim, hidden)
    v = jnp.einsum("ce,feh->fch", table, w1_emb)                   # (F, NC, H)
    v = v.reshape(num_embed_features * num_categories, hidden)     # (F*NC, H)
    flat_pad = ((v.shape[0] + 127) // 128) * 128
    v = jnp.pad(v, ((0, flat_pad - v.shape[0]), (0, 0)))           # (128, H)
    return w1_cont, v, b1, w2, b2


@functools.partial(jax.jit, static_argnames=("num_categories",))
def embedding_nn_forward(x, x_cat, w1_cont, v, b1, w2, b2, *, num_categories):
    """Per-call path: exactly one Pallas custom call, no wrapper math."""
    batch = x.shape[0]
    num_classes = w2.shape[1]
    kernel = functools.partial(embedding_nn_kernel,
                               num_categories=num_categories)
    vmem = pl.BlockSpec(memory_space=pltpu.MemorySpace.VMEM)
    return pl.pallas_call(
        kernel,
        out_shape=jax.ShapeDtypeStruct((batch, num_classes), jnp.float32),
        in_specs=[vmem] * 7,
        out_specs=vmem,
    )(x, x_cat.astype(jnp.int32), w1_cont, v, b1, w2, b2)


def reference_forward(x, x_cat, table, w1, b1, w2, b2, num_embed_features):
    embs = [table[x_cat[:, i]] for i in range(num_embed_features)]
    cat = jnp.concatenate([x] + embs, axis=1)
    h = jnp.maximum(cat @ w1 + b1, 0.0)
    return h @ w2 + b2


if __name__ == "__main__":
    # Module hyperparameters (small, consistent with the forward pass).
    input_size = 20
    num_embed_features = 4
    embed_dim = 8
    hidden_size = 32
    num_classes = 6
    num_embed_categories = 30
    batch = 8

    cont_in = input_size - num_embed_features                  # 16 continuous
    linear_inputs = cont_in + num_embed_features * embed_dim   # 48

    key = jax.random.PRNGKey(0)
    k_x, k_cat, k_emb, k_w1, k_b1, k_w2, k_b2 = jax.random.split(key, 7)

    x = jax.random.normal(k_x, (batch, cont_in), dtype=jnp.float32)
    x_cat = jax.random.randint(k_cat, (batch, num_embed_features), 0,
                               num_embed_categories, dtype=jnp.int32)

    # Deterministic parameter init (synthetic; not a checkpoint load).
    table = 0.1 * jax.random.normal(k_emb,
                                    (num_embed_categories, embed_dim),
                                    dtype=jnp.float32)
    w1 = 0.1 * jax.random.normal(k_w1, (linear_inputs, hidden_size),
                                 dtype=jnp.float32)
    b1 = 0.1 * jax.random.normal(k_b1, (1, hidden_size), dtype=jnp.float32)
    w2 = 0.1 * jax.random.normal(k_w2, (hidden_size, num_classes),
                                 dtype=jnp.float32)
    b2 = 0.1 * jax.random.normal(k_b2, (1, num_classes), dtype=jnp.float32)

    # ---- One-time parameter folding (outside the per-call path). ----
    folded = fold_params(table, w1, b1, w2, b2, cont_in=cont_in,
                         num_embed_features=num_embed_features,
                         embed_dim=embed_dim)
    folded = jax.block_until_ready(folded)

    # ---- Per-call path: one Pallas custom call. ----
    out = embedding_nn_forward(x, x_cat, *folded,
                               num_categories=num_embed_categories)
    out = jax.block_until_ready(out)

    ref = reference_forward(x, x_cat, table, w1, b1, w2, b2,
                            num_embed_features)
    assert out.shape == (batch, num_classes)
    assert jnp.allclose(out, ref, atol=1e-5, rtol=1e-5), "mismatch vs reference"

    print("KERNEL_OK")
</pallas_src>

<mosaic_0001>
module attributes {stable_mosaic.version = 11 : i64} {
  func.func @embedding_nn_kernel(%arg0: memref<8x16xf32, #tpu.memory_space<vmem>>, %arg1: memref<8x4xi32, #tpu.memory_space<vmem>>, %arg2: memref<16x32xf32, #tpu.memory_space<vmem>>, %arg3: memref<128x32xf32, #tpu.memory_space<vmem>>, %arg4: memref<1x32xf32, #tpu.memory_space<vmem>>, %arg5: memref<32x6xf32, #tpu.memory_space<vmem>>, %arg6: memref<1x6xf32, #tpu.memory_space<vmem>>, %arg7: memref<8x6xf32, #tpu.memory_space<vmem>>) attributes {dimension_semantics = [], scalar_prefetch = 0 : i64, scratch_operands = 0 : i64, tpu.core_type = #tpu.core_type<tc>} {
    %c0 = arith.constant 0 : index
    %c0_0 = arith.constant 0 : index
    %0 = vector.load %arg0[%c0, %c0_0] : memref<8x16xf32, #tpu.memory_space<vmem>>, vector<8x16xf32>
    %c0_1 = arith.constant 0 : index
    %c0_2 = arith.constant 0 : index
    %1 = vector.load %arg1[%c0_1, %c0_2] : memref<8x4xi32, #tpu.memory_space<vmem>>, vector<8x4xi32>
    %c0_3 = arith.constant 0 : index
    %c0_4 = arith.constant 0 : index
    %2 = vector.load %arg2[%c0_3, %c0_4] : memref<16x32xf32, #tpu.memory_space<vmem>>, vector<16x32xf32>
    %cst = arith.constant dense<0.000000e+00> : vector<8x32xf32>
    %3 = tpu.matmul %0, %2, %cst {dimension_numbers = #tpu.dot_dimension_numbers<[1], [0], [0], [1], [0, 0, 1, 1], [], []>} : vector<8x16xf32>, vector<16x32xf32>, vector<8x32xf32> -> vector<8x32xf32>
    %4 = tpu.iota {dimensions = array<i32: 1>} : vector<8x128xi32>
    %cst_5 = arith.constant 0.000000e+00 : f32
    %5 = vector.broadcast %cst_5 : f32 to vector<8x128xf32>
    %6 = vector.extract_strided_slice %1 {offsets = [0, 0], sizes = [8, 1], strides = [1, 1]} : vector<8x4xi32> to vector<8x1xi32>
    %c0_i32 = arith.constant 0 : i32
    %7 = vector.broadcast %c0_i32 : i32 to vector<8x1xi32>
    %8 = arith.addi %6, %7 : vector<8x1xi32>
    %9 = vector.broadcast %8 : vector<8x1xi32> to vector<8x128xi32>
    %10 = arith.cmpi eq, %9, %4 : vector<8x128xi32>
    %11 = arith.extui %10 : vector<8x128xi1> to vector<8x128xi32>
    %12 = arith.sitofp %11 : vector<8x128xi32> to vector<8x128xf32>
    %13 = arith.addf %5, %12 : vector<8x128xf32>
    %14 = vector.extract_strided_slice %1 {offsets = [0, 1], sizes = [8, 1], strides = [1, 1]} : vector<8x4xi32> to vector<8x1xi32>
    %c30_i32 = arith.constant 30 : i32
    %15 = vector.broadcast %c30_i32 : i32 to vector<8x1xi32>
    %16 = arith.addi %14, %15 : vector<8x1xi32>
    %17 = vector.broadcast %16 : vector<8x1xi32> to vector<8x128xi32>
    %18 = arith.cmpi eq, %17, %4 : vector<8x128xi32>
    %19 = arith.extui %18 : vector<8x128xi1> to vector<8x128xi32>
    %20 = arith.sitofp %19 : vector<8x128xi32> to vector<8x128xf32>
    %21 = arith.addf %13, %20 : vector<8x128xf32>
    %22 = vector.extract_strided_slice %1 {offsets = [0, 2], sizes = [8, 1], strides = [1, 1]} : vector<8x4xi32> to vector<8x1xi32>
    %c60_i32 = arith.constant 60 : i32
    %23 = vector.broadcast %c60_i32 : i32 to vector<8x1xi32>
    %24 = arith.addi %22, %23 : vector<8x1xi32>
    %25 = vector.broadcast %24 : vector<8x1xi32> to vector<8x128xi32>
    %26 = arith.cmpi eq, %25, %4 : vector<8x128xi32>
    %27 = arith.extui %26 : vector<8x128xi1> to vector<8x128xi32>
    %28 = arith.sitofp %27 : vector<8x128xi32> to vector<8x128xf32>
    %29 = arith.addf %21, %28 : vector<8x128xf32>
    %30 = vector.extract_strided_slice %1 {offsets = [0, 3], sizes = [8, 1], strides = [1, 1]} : vector<8x4xi32> to vector<8x1xi32>
    %c90_i32 = arith.constant 90 : i32
    %31 = vector.broadcast %c90_i32 : i32 to vector<8x1xi32>
    %32 = arith.addi %30, %31 : vector<8x1xi32>
    %33 = vector.broadcast %32 : vector<8x1xi32> to vector<8x128xi32>
    %34 = arith.cmpi eq, %33, %4 : vector<8x128xi32>
    %35 = arith.extui %34 : vector<8x128xi1> to vector<8x128xi32>
    %36 = arith.sitofp %35 : vector<8x128xi32> to vector<8x128xf32>
    %37 = arith.addf %29, %36 : vector<8x128xf32>
    %c0_6 = arith.constant 0 : index
    %c0_7 = arith.constant 0 : index
    %38 = vector.load %arg3[%c0_6, %c0_7] : memref<128x32xf32, #tpu.memory_space<vmem>>, vector<128x32xf32>
    %cst_8 = arith.constant dense<0.000000e+00> : vector<8x32xf32>
    %39 = tpu.matmul %37, %38, %cst_8 {dimension_numbers = #tpu.dot_dimension_numbers<[1], [0], [0], [1], [0, 0, 1, 1], [], []>} : vector<8x128xf32>, vector<128x32xf32>, vector<8x32xf32> -> vector<8x32xf32>
    %40 = arith.addf %3, %39 : vector<8x32xf32>
    %c0_9 = arith.constant 0 : index
    %c0_10 = arith.constant 0 : index
    %41 = vector.load %arg4[%c0_9, %c0_10] : memref<1x32xf32, #tpu.memory_space<vmem>>, vector<1x32xf32>
    %42 = vector.broadcast %41 : vector<1x32xf32> to vector<8x32xf32>
    %43 = arith.addf %40, %42 : vector<8x32xf32>
    %cst_11 = arith.constant 0.000000e+00 : f32
    %44 = vector.broadcast %cst_11 : f32 to vector<8x32xf32>
    %45 = arith.maximumf %43, %44 : vector<8x32xf32>
    %c0_12 = arith.constant 0 : index
    %c0_13 = arith.constant 0 : index
    %46 = vector.load %arg5[%c0_12, %c0_13] : memref<32x6xf32, #tpu.memory_space<vmem>>, vector<32x6xf32>
    %cst_14 = arith.constant dense<0.000000e+00> : vector<8x6xf32>
    %47 = tpu.matmul %45, %46, %cst_14 {dimension_numbers = #tpu.dot_dimension_numbers<[1], [0], [0], [1], [0, 0, 1, 1], [], []>} : vector<8x32xf32>, vector<32x6xf32>, vector<8x6xf32> -> vector<8x6xf32>
    %c0_15 = arith.constant 0 : index
    %c0_16 = arith.constant 0 : index
    %48 = vector.load %arg6[%c0_15, %c0_16] : memref<1x6xf32, #tpu.memory_space<vmem>>, vector<1x6xf32>
    %49 = vector.broadcast %48 : vector<1x6xf32> to vector<8x6xf32>
    %50 = arith.addf %47, %49 : vector<8x6xf32>
    %c0_17 = arith.constant 0 : index
    %c0_18 = arith.constant 0 : index
    %51 = vector.load %arg7[%c0_17, %c0_18] : memref<8x6xf32, #tpu.memory_space<vmem>>, vector<8x6xf32>
    tpu.vector_store %arg7[%c0_17, %c0_18], %50 {strides = array<i32>} : memref<8x6xf32, #tpu.memory_space<vmem>>, vector<8x6xf32>,
    return
  }
}

</mosaic_0001>

<llo_original>
// kernel: embedding_nn_forward.1
$region0: #{embedding_nn_forward.1}
  #allocation0 [shape = 'u32[]', space=smem, size = 0x4, offset = 0x4, fixed_abs, tag = 'smem constant byte address 0x4 - core index']
  #allocation1 [shape = 'u32[144,128]{1,0:T(1,128)}', space=vmem, size = 0x12000, scoped, tag = 'internal scratch']
  %s0 = inlined_call_operand.vmem [shape: f32[8,16], index: 0, kind: input, shape index: {}]
  %s1 = inlined_call_operand.vmem [shape: s32[8,4], index: 1, kind: input, shape index: {}]
  %s2 = inlined_call_operand.vmem [shape: f32[16,32], index: 2, kind: input, shape index: {}]
  %s3 = inlined_call_operand.vmem [shape: f32[128,32], index: 3, kind: input, shape index: {}]
  %s4 = inlined_call_operand.vmem [shape: f32[1,32], index: 4, kind: input, shape index: {}]
  %s5 = inlined_call_operand.vmem [shape: f32[32,6], index: 5, kind: input, shape index: {}]
  %s6 = inlined_call_operand.vmem [shape: f32[1,6], index: 6, kind: input, shape index: {}]
  %s7 = inlined_call_operand.hbm [shape: f32[8,6], index: 7, kind: output, shape index: {}]
  %s8 = sld [smem:[#allocation0]]
  $region38: #{embedding_nn_forward.1} parent=0
    _
  %s10 = ssub.s32 1, %s8
  %s11 = scalar_select 0, %s10, %s8
  $region1: #{embedding_nn_forward.1} parent=0
    #allocation2 [shape = 'u8[4096]{0}', space=vmem, size = 0x1000, scoped, tag = 'output window, operand 0, single buffered']
    #allocation3 [shape = 's32[1]{0}', space=sflag, size = 0x4, scoped, tag = 'scoped memory for embedding_nn_forward.1']
    %12 = vsyncpa [#allocation3], 0
    // Predicated region
    $region2: #{embedding_nn_forward.1} parent=1 // pred_check
      _
    $region3: #{embedding_nn_forward.1} parent=1 // pred_check_branch
      %14 = sbr.rel (0) target = $region5
    $region4: #{embedding_nn_forward.1} parent=1 // pred_region
      _
    $region5: #{embedding_nn_forward.1} parent=1 // pred_fallthru
      _
    // Predicated region
    $region6: #{embedding_nn_forward.1} parent=1 // pred_check
      _
    $region7: #{embedding_nn_forward.1} parent=1 // pred_check_branch
      %16 = sbr.rel (0) target = $region9
    $region8: #{embedding_nn_forward.1} parent=1 // pred_region
      _
    $region9: #{embedding_nn_forward.1} parent=1 // pred_fallthru
      _
    // Predicated region
    $region10: #{embedding_nn_forward.1} parent=1 // pred_check
      _
    $region11: #{embedding_nn_forward.1} parent=1 // pred_check_branch
      %18 = sbr.rel (0) target = $region13
    $region12: #{embedding_nn_forward.1} parent=1 // pred_region
      _
    $region13: #{embedding_nn_forward.1} parent=1 // pred_fallthru
      _
    // Predicated region
    $region14: #{embedding_nn_forward.1} parent=1 // pred_check
      _
    $region15: #{embedding_nn_forward.1} parent=1 // pred_check_branch
      %20 = sbr.rel (0) target = $region17
    $region16: #{embedding_nn_forward.1} parent=1 // pred_region
      _
    $region17: #{embedding_nn_forward.1} parent=1 // pred_fallthru
      _
    // Predicated region
    $region18: #{embedding_nn_forward.1} parent=1 // pred_check
      _
    $region19: #{embedding_nn_forward.1} parent=1 // pred_check_branch
      %22 = sbr.rel (0) target = $region21
    $region20: #{embedding_nn_forward.1} parent=1 // pred_region
      _
    $region21: #{embedding_nn_forward.1} parent=1 // pred_fallthru
      _
    // Predicated region
    $region22: #{embedding_nn_forward.1} parent=1 // pred_check
      _
    $region23: #{embedding_nn_forward.1} parent=1 // pred_check_branch
      %24 = sbr.rel (0) target = $region25
    $region24: #{embedding_nn_forward.1} parent=1 // pred_region
      _
    $region25: #{embedding_nn_forward.1} parent=1 // pred_fallthru
      _
    // Predicated region
    $region26: #{embedding_nn_forward.1} parent=1 // pred_check
      _
    $region27: #{embedding_nn_forward.1} parent=1 // pred_check_branch
      %26 = sbr.rel (0) target = $region29
    $region28: #{embedding_nn_forward.1} parent=1 // pred_region
      _
    $region29: #{embedding_nn_forward.1} parent=1 // pred_fallthru
      _
    %v27 = vld [vmem:[%s0] sm:$0xff]
    %v28 = vld [vmem:[%s1] sm:$0xff]
    %v29 = vld [vmem:[%s2] sm:$0xff]
    %v30 = vld [vmem:[%s2 + $0x8] sm:$0xff]
    %v31 = vlaneseq
    %v32 = vand.u32 %v31, 127
    %33 = vset.pattern.permute.xlu0 0
    %34 = vperm.xlu0 %33, %v28
    %v35 = vpop.permute.xlu0 %34
    %vm36 = vcmp.eq.s32.totalorder %v35, %v32
    %v37 = vsel %vm36, 1, 0
    %v38 = vcvt.s32.f32 %v37
    %v39 = vadd.f32 %v38, 0.0
    %v40 = vadd.s32 %v28, 30
    %41 = vset.pattern.permute.xlu0 1
    %42 = vperm.xlu0 %41, %v40
    %v43 = vpop.permute.xlu0 %42
    %vm44 = vcmp.eq.s32.totalorder %v43, %v32
    %v45 = vsel %vm44, 1, 0
    %v46 = vcvt.s32.f32 %v45
    %v47 = vadd.f32 %v39, %v46
    %v48 = vadd.s32 %v28, 60
    %49 = vset.pattern.permute.xlu0 2
    %50 = vperm.xlu0 %49, %v48
    %v51 = vpop.permute.xlu0 %50
    %vm52 = vcmp.eq.s32.totalorder %v51, %v32
    %v53 = vsel %vm52, 1, 0
    %v54 = vcvt.s32.f32 %v53
    %v55 = vadd.f32 %v47, %v54
    %v56 = vadd.s32 %v28, 90
    %57 = vset.pattern.permute.xlu0 3
    %58 = vperm.xlu0 %57, %v56
    %v59 = vpop.permute.xlu0 %58
    %vm60 = vcmp.eq.s32.totalorder %v59, %v32
    %v61 = vsel %vm60, 1, 0
    %v62 = vcvt.s32.f32 %v61
    %v63 = vadd.f32 %v55, %v62
    %v64 = vld [vmem:[%s3] sm:$0xff]
    %v65 = vld [vmem:[%s3 + $0x8] sm:$0xff]
    %v66 = vld [vmem:[%s3 + $0x10] sm:$0xff]
    %v67 = vld [vmem:[%s3 + $0x18] sm:$0xff]
    %v68 = vld [vmem:[%s3 + $0x20] sm:$0xff]
    %v69 = vld [vmem:[%s3 + $0x28] sm:$0xff]
    %v70 = vld [vmem:[%s3 + $0x30] sm:$0xff]
    %v71 = vld [vmem:[%s3 + $0x38] sm:$0xff]
    %v72 = vld [vmem:[%s3 + $0x40] sm:$0xff]
    %v73 = vld [vmem:[%s3 + $0x48] sm:$0xff]
    %v74 = vld [vmem:[%s3 + $0x50] sm:$0xff]
    %v75 = vld [vmem:[%s3 + $0x58] sm:$0xff]
    %v76 = vld [vmem:[%s3 + $0x60] sm:$0xff]
    %v77 = vld [vmem:[%s3 + $0x68] sm:$0xff]
    %v78 = vld [vmem:[%s3 + $0x70] sm:$0xff]
    %v79 = vld [vmem:[%s3 + $0x78] sm:$0xff]
    %80 = vmatprep.subr.mxu0 0.0
    %81 = vmatpush1.msra.mxu0 %v79
    %82 = vmatprep.subr.mxu0 0.0
    %83 = vmatpush1.msra.mxu0 %v78
    %84 = vmatprep.subr.mxu0 0.0
    %85 = vmatpush1.msra.mxu0 %v77
    %86 = vmatprep.subr.mxu0 0.0
    %87 = vmatpush1.msra.mxu0 %v76
    %88 = vmatprep.subr.mxu0 0.0
    %89 = vmatpush1.msra.mxu0 %v75
    %90 = vmatprep.subr.mxu0 0.0
    %91 = vmatpush1.msra.mxu0 %v74
    %92 = vmatprep.subr.mxu0 0.0
    %93 = vmatpush1.msra.mxu0 %v73
    %94 = vmatprep.subr.mxu0 0.0
    %95 = vmatpush1.msra.mxu0 %v72
    %96 = vmatprep.subr.mxu0 0.0
    %97 = vmatpush1.msra.mxu0 %v71
    %98 = vmatprep.subr.mxu0 0.0
    %99 = vmatpush1.msra.mxu0 %v70
    %100 = vmatprep.subr.mxu0 0.0
    %101 = vmatpush1.msra.mxu0 %v69
    %102 = vmatprep.subr.mxu0 0.0
    %103 = vmatpush1.msra.mxu0 %v68
    %104 = vmatprep.subr.mxu0 0.0
    %105 = vmatpush1.msra.mxu0 %v67
    %106 = vmatprep.subr.mxu0 0.0
    %107 = vmatpush1.msra.mxu0 %v66
    %108 = vmatprep.subr.mxu0 0.0
    %109 = vmatpush1.msra.mxu0 %v65
    %110 = vmatprep.subr.mxu0 0.0
    %111 = vmatpush1.msra.mxu0 %v64
    %112 = vmatprep.subr.mxu0 0.0
    %113 = vmatpush2.msra.mxu0 0.0
    %114 = vmatprep.subr.mxu0 0.0
    %115 = vmatpush2.msra.mxu0 0.0
    %116 = vmatprep.subr.mxu0 0.0
    %117 = vmatpush2.msra.mxu0 0.0
    %118 = vmatprep.subr.mxu0 0.0
    %119 = vmatpush2.msra.mxu0 0.0
    %120 = vmatprep.subr.mxu0 0.0
    %121 = vmatpush2.msra.mxu0 0.0
    %122 = vmatprep.subr.mxu0 0.0
    %123 = vmatpush2.msra.mxu0 0.0
    %124 = vmatprep.subr.mxu0 0.0
    %125 = vmatpush2.msra.mxu0 0.0
    %126 = vmatprep.subr.mxu0 0.0
    %127 = vmatpush2.msra.mxu0 0.0
    %128 = vmatprep.subr.mxu0 0.0
    %129 = vmatpush2.msra.mxu0 0.0
    %130 = vmatprep.subr.mxu0 0.0
    %131 = vmatpush2.msra.mxu0 0.0
    %132 = vmatprep.subr.mxu0 0.0
    %133 = vmatpush2.msra.mxu0 0.0
    %134 = vmatprep.subr.mxu0 0.0
    %135 = vmatpush2.msra.mxu0 0.0
    %136 = vmatprep.subr.mxu0 0.0
    %137 = vmatpush2.msra.mxu0 0.0
    %138 = vmatprep.subr.mxu0 0.0
    %139 = vmatpush2.msra.mxu0 0.0
    %140 = vmatprep.subr.mxu0 0.0
    %141 = vmatpush2.msra.mxu0 0.0
    %142 = vmatprep.subr.mxu0 0.0
    %143 = vmatpush2.msra.mxu0 0.0
    %144 = vmatprep.mubr.f32.mxu0 0.0
    %145 = vmatmul.mubr.f32.gmra.mxu0 %v63
    %v146 = vpop.f32.mrf.mxu0
    %v147 = vadd.f32 0.0, %v146
    %v148 = vpop.f32.mrf.mxu0
    %149 = vdwg.mxu0
    %vm150 = vcmask 130048
    %v152 = vsel %vm150, %v27, 0
    %154 = vmatprep.subr.mxu0 0.0
    %155 = vmatpush1.msra.mxu0 0.0
    %156 = vmatprep.subr.mxu0 0.0
    %157 = vmatpush1.msra.mxu0 0.0
    %158 = vmatprep.subr.mxu0 0.0
    %159 = vmatpush1.msra.mxu0 0.0
    %160 = vmatprep.subr.mxu0 0.0
    %161 = vmatpush1.msra.mxu0 0.0
    %162 = vmatprep.subr.mxu0 0.0
    %163 = vmatpush1.msra.mxu0 0.0
    %164 = vmatprep.subr.mxu0 0.0
    %165 = vmatpush1.msra.mxu0 0.0
    %166 = vmatprep.subr.mxu0 0.0
    %167 = vmatpush1.msra.mxu0 0.0
    %168 = vmatprep.subr.mxu0 0.0
    %169 = vmatpush1.msra.mxu0 0.0
    %170 = vmatprep.subr.mxu0 0.0
    %171 = vmatpush1.msra.mxu0 0.0
    %172 = vmatprep.subr.mxu0 0.0
    %173 = vmatpush1.msra.mxu0 0.0
    %174 = vmatprep.subr.mxu0 0.0
    %175 = vmatpush1.msra.mxu0 0.0
    %176 = vmatprep.subr.mxu0 0.0
    %177 = vmatpush1.msra.mxu0 0.0
    %178 = vmatprep.subr.mxu0 0.0
    %179 = vmatpush1.msra.mxu0 0.0
    %180 = vmatprep.subr.mxu0 0.0
    %181 = vmatpush1.msra.mxu0 0.0
    %182 = vmatprep.subr.mxu0 0.0
    %183 = vmatpush1.msra.mxu0 %v30
    %184 = vmatprep.subr.mxu0 0.0
    %185 = vmatpush1.msra.mxu0 %v29
    %186 = vmatprep.subr.mxu0 0.0
    %187 = vmatpush2.msra.mxu0 0.0
    %188 = vmatprep.subr.mxu0 0.0
    %189 = vmatpush2.msra.mxu0 0.0
    %190 = vmatprep.subr.mxu0 0.0
    %191 = vmatpush2.msra.mxu0 0.0
    %192 = vmatprep.subr.mxu0 0.0
    %193 = vmatpush2.msra.mxu0 0.0
    %194 = vmatprep.subr.mxu0 0.0
    %195 = vmatpush2.msra.mxu0 0.0
    %196 = vmatprep.subr.mxu0 0.0
    %197 = vmatpush2.msra.mxu0 0.0
    %198 = vmatprep.subr.mxu0 0.0
    %199 = vmatpush2.msra.mxu0 0.0
    %200 = vmatprep.subr.mxu0 0.0
    %201 = vmatpush2.msra.mxu0 0.0
    %202 = vmatprep.subr.mxu0 0.0
    %203 = vmatpush2.msra.mxu0 0.0
    %204 = vmatprep.subr.mxu0 0.0
    %205 = vmatpush2.msra.mxu0 0.0
    %206 = vmatprep.subr.mxu0 0.0
    %207 = vmatpush2.msra.mxu0 0.0
    %208 = vmatprep.subr.mxu0 0.0
    %209 = vmatpush2.msra.mxu0 0.0
    %210 = vmatprep.subr.mxu0 0.0
    %211 = vmatpush2.msra.mxu0 0.0
    %212 = vmatprep.subr.mxu0 0.0
    %213 = vmatpush2.msra.mxu0 0.0
    %214 = vmatprep.subr.mxu0 0.0
    %215 = vmatpush2.msra.mxu0 0.0
    %216 = vmatprep.subr.mxu0 0.0
    %217 = vmatpush2.msra.mxu0 0.0
    %218 = vmatprep.mubr.f32.mxu0 0.0
    %219 = vmatmul.mubr.f32.gmra.mxu0 %v152
    %v220 = vpop.f32.mrf.mxu0
    %v221 = vadd.f32 %v147, %v220
    %v222 = vpop.f32.mrf.mxu0
    %223 = vdwg.mxu0
    %v224 = vld [vmem:[%s4] sm:$0x1]
    %v226 = vlaneseq
    %v227 = vshrl.u32 %v226, 7
    %v228 = vsub.s32 0, %v227
    %v229 = vrot.slane %v224, %v228
    %v231 = vadd.f32 %v221, %v229
    %v232 = vmax.f32 %v231, 0.0
    %v233 = vld [vmem:[%s5] sm:$0xff]
    %v234 = vld [vmem:[%s5 + $0x8] sm:$0xff]
    %v235 = vld [vmem:[%s5 + $0x10] sm:$0xff]
    %v236 = vld [vmem:[%s5 + $0x18] sm:$0xff]
    %v237 = vld [vmem:[%s6] sm:$0x1]
    %v239 = vlaneseq
    %v240 = vshrl.u32 %v239, 7
    %v241 = vsub.s32 0, %v240
    %v242 = vrot.slane %v237, %v241
    %vm244 = vcmask 261120
    %v246 = vsel %vm244, %v232, 0
    %248 = vmatprep.subr.mxu0 0.0
    %249 = vmatpush1.msra.mxu0 0.0
    %250 = vmatprep.subr.mxu0 0.0
    %251 = vmatpush1.msra.mxu0 0.0
    %252 = vmatprep.subr.mxu0 0.0
    %253 = vmatpush1.msra.mxu0 0.0
    %254 = vmatprep.subr.mxu0 0.0
    %255 = vmatpush1.msra.mxu0 0.0
    %256 = vmatprep.subr.mxu0 0.0
    %257 = vmatpush1.msra.mxu0 0.0
    %258 = vmatprep.subr.mxu0 0.0
    %259 = vmatpush1.msra.mxu0 0.0
    %260 = vmatprep.subr.mxu0 0.0
    %261 = vmatpush1.msra.mxu0 0.0
    %262 = vmatprep.subr.mxu0 0.0
    %263 = vmatpush1.msra.mxu0 0.0
    %264 = vmatprep.subr.mxu0 0.0
    %265 = vmatpush1.msra.mxu0 0.0
    %266 = vmatprep.subr.mxu0 0.0
    %267 = vmatpush1.msra.mxu0 0.0
    %268 = vmatprep.subr.mxu0 0.0
    %269 = vmatpush1.msra.mxu0 0.0
    %270 = vmatprep.subr.mxu0 0.0
    %271 = vmatpush1.msra.mxu0 0.0
    %272 = vmatprep.subr.mxu0 0.0
    %273 = vmatpush1.msra.mxu0 %v236
    %274 = vmatprep.subr.mxu0 0.0
    %275 = vmatpush1.msra.mxu0 %v235
    %276 = vmatprep.subr.mxu0 0.0
    %277 = vmatpush1.msra.mxu0 %v234
    %278 = vmatprep.subr.mxu0 0.0
    %279 = vmatpush1.msra.mxu0 %v233
    %280 = vmatprep.subr.mxu0 0.0
    %281 = vmatpush2.msra.mxu0 0.0
    %282 = vmatprep.subr.mxu0 0.0
    %283 = vmatpush2.msra.mxu0 0.0
    %284 = vmatprep.subr.mxu0 0.0
    %285 = vmatpush2.msra.mxu0 0.0
    %286 = vmatprep.subr.mxu0 0.0
    %287 = vmatpush2.msra.mxu0 0.0
    %288 = vmatprep.subr.mxu0 0.0
    %289 = vmatpush2.msra.mxu0 0.0
    %290 = vmatprep.subr.mxu0 0.0
    %291 = vmatpush2.msra.mxu0 0.0
    %292 = vmatprep.subr.mxu0 0.0
    %293 = vmatpush2.msra.mxu0 0.0
    %294 = vmatprep.subr.mxu0 0.0
    %295 = vmatpush2.msra.mxu0 0.0
    %296 = vmatprep.subr.mxu0 0.0
    %297 = vmatpush2.msra.mxu0 0.0
    %298 = vmatprep.subr.mxu0 0.0
    %299 = vmatpush2.msra.mxu0 0.0
    %300 = vmatprep.subr.mxu0 0.0
    %301 = vmatpush2.msra.mxu0 0.0
    %302 = vmatprep.subr.mxu0 0.0
    %303 = vmatpush2.msra.mxu0 0.0
    %304 = vmatprep.subr.mxu0 0.0
    %305 = vmatpush2.msra.mxu0 0.0
    %306 = vmatprep.subr.mxu0 0.0
    %307 = vmatpush2.msra.mxu0 0.0
    %308 = vmatprep.subr.mxu0 0.0
    %309 = vmatpush2.msra.mxu0 0.0
    %310 = vmatprep.subr.mxu0 0.0
    %311 = vmatpush2.msra.mxu0 0.0
    %312 = vmatprep.mubr.f32.mxu0 0.0
    %313 = vmatmul.mubr.f32.gmra.mxu0 %v246
    %v314 = vpop.f32.mrf.mxu0
    %v315 = vadd.f32 %v242, %v314
    %v316 = vpop.f32.mrf.mxu0
    %317 = vdwg.mxu0
    %vm318 = vcmask 48128
    %319 = vst.msk [vmem:[#allocation2] sm:$0xff] %vm318, %v315
    // Predicated region
    $region30: #{embedding_nn_forward.1} parent=1 // pred_check
      _
    $region31: #{embedding_nn_forward.1} parent=1 // pred_check_branch
      %321 = sbr.rel (0) target = $region33
    $region32: #{embedding_nn_forward.1} parent=1 // pred_region
      %s323 = ssub.s32 128, 128
      %324 = vsyncadd [#allocation3], %s323
      %s326 = sshll.u32 [#allocation2], 4
      %s327 = int_to_ptr.vmem [resolvable:$true] %s326
      %329 = dma.vmem_to_hbm [thread:$0]  %s327, 128, %s7, [#allocation3]
    $region33: #{embedding_nn_forward.1} parent=1 // pred_fallthru
      _
    // Predicated region
    $region34: #{embedding_nn_forward.1} parent=1 // pred_check
      _
    $region35: #{embedding_nn_forward.1} parent=1 // pred_check_branch
      %331 = sbr.rel (0) target = $region37
    $region36: #{embedding_nn_forward.1} parent=1 // pred_region
      %332 = dma.done [#allocation3], 128
    $region37: #{embedding_nn_forward.1} parent=1 // pred_fallthru
      _
    %333 = vsyncpa [#allocation3], 1

</llo_original>
